<compile_context>
chip_gen: v5e
topology: v5e:2x2
jax: 0.10.0
libtpu: 0.0.40
codegen_flags: <defaults>
</compile_context>

<pallas_src>
import functools

import jax
import jax.numpy as jnp
from jax.experimental import pallas as pl
from jax.experimental.pallas import tpu as pltpu


def _round_up(x: int, k: int) -> int:
    return ((x + k - 1) // k) * k


def _mi_loss_kernel(x_ref, *rest, m: int, n: int, p: int, d: int, tb: int,
                    batch: int, use_dot: bool):
    """One block of tb samples.

    x_ref  : (tb, m*n*p) flat per-sample layout [m-major, n-mid, p-minor]
    s_ref  : (n*p, p)    0/1 n-summation matrix (only when use_dot)
    out_ref: (1, 1, 1)   masked sum of this block's per-sample MI terms
    """
    if use_dot:
        s_ref, out_ref = rest
    else:
        (out_ref,) = rest
    f32 = jnp.float32

    # Pass 1: per-sample max over the full m*n*p axis (chunked over m so a
    # bf16 input never needs a full-block f32 copy).
    x_max = jnp.full((tb, 1), -jnp.inf, dtype=f32)
    for j in range(m):
        cj = x_ref[:, j * d:(j + 1) * d].astype(f32)
        x_max = jnp.maximum(x_max, jnp.max(cj, axis=1, keepdims=True))

    # Pass 2: fused exp + n-sum + Z-sum, one (tb, d) chunk at a time.  Only the
    # small unnormalized (tb, p) marginals (one per m) stay live.
    z = jnp.zeros((tb, 1), dtype=f32)
    e_mt = []
    for j in range(m):
        ej = jnp.exp(x_ref[:, j * d:(j + 1) * d].astype(f32) - x_max)   # (tb, d)
        if use_dot:
            # n-sum on the idle MXU: exact f32 matmul against a 0/1 matrix.
            mt_j = jnp.dot(ej, s_ref[...], preferred_element_type=f32)  # (tb, p)
        else:
            mt_j = ej[:, 0:p]
            for k in range(1, n):
                mt_j = mt_j + ej[:, k * p:(k + 1) * p]                  # (tb, p)
        z = z + jnp.sum(mt_j, axis=1, keepdims=True)
        e_mt.append(mt_j)

    # Softmax normalization applied to the small marginals only.
    inv_z = pl.reciprocal(z)                                            # exact
    t_un = e_mt[0]
    for j in range(1, m):
        t_un = t_un + e_mt[j]
    p_t = t_un * inv_z                                                  # (tb, p)

    acc = jnp.zeros((tb, 1), dtype=f32)
    for j in range(m):
        p_mt_j = e_mt[j] * inv_z                                        # (tb, p)
        p_m_j = jnp.sum(p_mt_j, axis=1, keepdims=True)                  # (tb, 1)
        denom = p_m_j * p_t                                             # (tb, p)
        # Exact reciprocal kept here (approx=True is nearly free but this
        # tensor is tiny and exactness keeps the 1e-4 rtol check safe).
        log_term = jnp.log(p_mt_j * pl.reciprocal(denom) + 1e-10)
        acc = acc + jnp.sum(p_mt_j * log_term, axis=1, keepdims=True)

    # Mask padded samples and reduce the whole block to one scalar, so the
    # output write is 4 bytes per block (no lane-padded masked stores).
    row = jax.lax.broadcasted_iota(jnp.int32, (tb, 1), 0)
    valid = (pl.program_id(0) * tb + row) < batch
    acc = jnp.where(valid, acc, 0.0)
    out_ref[...] = jnp.sum(acc, axis=0, keepdims=True).reshape(1, 1, 1)


def mutual_information_loss(phi: jnp.ndarray, epsilon: float = 1e-4) -> jnp.ndarray:
    """Pallas TPU implementation of MutualInformationLoss.forward."""
    del epsilon  # stored but unused in the PyTorch forward
    B, m, n, p = phi.shape
    d = n * p
    md = m * d
    itemsize = jnp.dtype(phi.dtype).itemsize

    # Flatten each sample to one lane-dense row: (tb, m, d) blocks waste
    # sublanes when m < 8; (tb, m*d) packs samples densely on sublanes.
    x = phi.reshape(B, md)

    # n-sum strategy: lane-aligned / short unrolled slice-adds when cheap,
    # otherwise one exact f32 MXU contraction with a constant 0/1 matrix.
    use_dot = (p % 128 != 0) and (n > 8)

    # Physical VMEM; conservative fallback = v7x's 64 MiB per TensorCore.
    try:
        vmem_cap = int(pltpu.get_tpu_info().vmem_capacity_bytes)
    except Exception:  # pragma: no cover - defensive fallback
        vmem_cap = 64 * 1024 * 1024

    # Per-sample VMEM footprint: double-buffered input + chunked f32 work set
    # (one (tb, d) exp chunk, m unnormalized (tb, p) marginals, temporaries).
    per_sample = 2 * md * itemsize + 4 * (2 * d + (m + 6) * p + 16)

    # Block budget ~1/4 of physical VMEM: ~8-16 MiB input blocks on v5e/v6e
    # (128 MiB VMEM), ~4-8 MiB on v7x (64 MiB VMEM).
    budget = max(vmem_cap // 4, 4 * 1024 * 1024)
    tb = max(1, budget // max(per_sample, 1))
    if B > 1:
        tb = min(tb, pl.cdiv(B, 2))       # >= 2 grid steps: keep both v7x TCs fed
    tb = min(tb, B)
    nb = pl.cdiv(B, tb)
    if nb == 1:
        tb = B                            # single block == full array, no padding
    else:
        tb = _round_up(pl.cdiv(B, nb), 8)  # balanced, sublane-aligned blocks
    b_pad = _round_up(B, tb)
    nb = b_pad // tb
    if b_pad > B:
        # Zero rows are numerically benign and masked out inside the kernel.
        x = jnp.pad(x, ((0, b_pad - B), (0, 0)))

    in_specs = [pl.BlockSpec((tb, md), lambda i: (i, 0))]
    args = [x]
    if use_dot:
        s = jnp.tile(jnp.eye(p, dtype=jnp.float32), (n, 1))             # (d, p)
        in_specs.append(pl.BlockSpec((d, p), lambda i: (0, 0)))
        args.append(s)

    # Scoped VMEM limit derived from the actual working set, capped below the
    # chip's physical VMEM (leaves headroom on v7x's 64 MiB).
    vmem_need = (2 * tb * md * itemsize
                 + tb * 4 * (2 * d + (m + 6) * p + 16)
                 + (2 * d * p * 4 if use_dot else 0)
                 + (2 << 20))
    vmem_limit = int(min(max(vmem_need, 32 << 20),
                         max(vmem_cap - (8 << 20), 32 << 20)))

    kernel = functools.partial(_mi_loss_kernel, m=m, n=n, p=p, d=d, tb=tb,
                               batch=B, use_dot=use_dot)
    per_block = pl.pallas_call(
        kernel,
        out_shape=jax.ShapeDtypeStruct((nb, 1, 1), jnp.float32),
        grid=(nb,),
        in_specs=in_specs,
        out_specs=pl.BlockSpec((1, 1, 1), lambda i: (i, 0, 0)),
        compiler_params=pltpu.CompilerParams(
            dimension_semantics=("parallel",),   # independent per-block scalars
            vmem_limit_bytes=vmem_limit,
        ),
    )(*args)
    return -jnp.sum(per_block)


def _reference(phi):
    """Pure-JAX reference mirroring the PyTorch code line by line."""
    B, m, n, p = phi.shape
    flat = phi.reshape(B, m * n * p)
    sm = jax.nn.softmax(flat, axis=1).reshape(B, m, n, p)
    p_m = sm.sum(axis=(2, 3))
    p_t = sm.sum(axis=(1, 2))
    p_mt = sm.sum(axis=2)
    denom = p_m[:, :, None] * p_t[:, None, :]
    log_term = jnp.log(p_mt / denom + 1e-10)
    return -jnp.sum(p_mt * log_term)


if __name__ == "__main__":
    key = jax.random.PRNGKey(0)
    B, m, n, p = 2, 4, 8, 16
    phi = jax.random.normal(key, (B, m, n, p), dtype=jnp.float32)

    loss = jax.block_until_ready(mutual_information_loss(phi))
    ref = jax.block_until_ready(_reference(phi))

    assert bool(jnp.isfinite(loss)), "kernel produced non-finite loss"
    assert bool(jnp.allclose(loss, ref, rtol=1e-4, atol=1e-5)), (loss, ref)
    print("KERNEL_OK")
</pallas_src>

<mosaic_0001>
module attributes {stable_mosaic.version = 11 : i64} {
  func.func @_mi_loss_kernel(%arg0: i32, %arg1: memref<8x512xf32, #tpu.memory_space<vmem>>, %arg2: memref<1x1x1xf32, #tpu.memory_space<vmem>>) attributes {dimension_semantics = [#tpu.dimension_semantics<parallel>], iteration_bounds = array<i64: 1>, scalar_prefetch = 0 : i64, scratch_operands = 0 : i64, tpu.core_type = #tpu.core_type<tc>, window_params = [{transform_indices = @transform_0, window_bounds = array<i64: 8, 512>}, {transform_indices = @transform_1, window_bounds = array<i64: 1, 1, 1>}]} {
    %cst = arith.constant 0xFF800000 : f32
    %0 = vector.broadcast %cst : f32 to vector<8x1xf32>
    %c0 = arith.constant 0 : index
    %c0_0 = arith.constant 0 : index
    %1 = vector.load %arg1[%c0, %c0_0] : memref<8x512xf32, #tpu.memory_space<vmem>>, vector<8x128xf32>
    %cst_1 = arith.constant dense<0xFF800000> : vector<8xf32>
    %2 = vector.multi_reduction <maximumf>, %1, %cst_1 [1] : vector<8x128xf32> to vector<8xf32>
    %3 = vector.shape_cast %2 : vector<8xf32> to vector<8x1xf32>
    %4 = arith.maximumf %0, %3 : vector<8x1xf32>
    %c0_2 = arith.constant 0 : index
    %c128 = arith.constant 128 : index
    %5 = vector.load %arg1[%c0_2, %c128] : memref<8x512xf32, #tpu.memory_space<vmem>>, vector<8x128xf32>
    %cst_3 = arith.constant dense<0xFF800000> : vector<8xf32>
    %6 = vector.multi_reduction <maximumf>, %5, %cst_3 [1] : vector<8x128xf32> to vector<8xf32>
    %7 = vector.shape_cast %6 : vector<8xf32> to vector<8x1xf32>
    %8 = arith.maximumf %4, %7 : vector<8x1xf32>
    %c0_4 = arith.constant 0 : index
    %c256 = arith.constant 256 : index
    %9 = vector.load %arg1[%c0_4, %c256] : memref<8x512xf32, #tpu.memory_space<vmem>>, vector<8x128xf32>
    %cst_5 = arith.constant dense<0xFF800000> : vector<8xf32>
    %10 = vector.multi_reduction <maximumf>, %9, %cst_5 [1] : vector<8x128xf32> to vector<8xf32>
    %11 = vector.shape_cast %10 : vector<8xf32> to vector<8x1xf32>
    %12 = arith.maximumf %8, %11 : vector<8x1xf32>
    %c0_6 = arith.constant 0 : index
    %c384 = arith.constant 384 : index
    %13 = vector.load %arg1[%c0_6, %c384] : memref<8x512xf32, #tpu.memory_space<vmem>>, vector<8x128xf32>
    %cst_7 = arith.constant dense<0xFF800000> : vector<8xf32>
    %14 = vector.multi_reduction <maximumf>, %13, %cst_7 [1] : vector<8x128xf32> to vector<8xf32>
    %15 = vector.shape_cast %14 : vector<8xf32> to vector<8x1xf32>
    %16 = arith.maximumf %12, %15 : vector<8x1xf32>
    %cst_8 = arith.constant 0.000000e+00 : f32
    %17 = vector.broadcast %cst_8 : f32 to vector<8x1xf32>
    %c0_9 = arith.constant 0 : index
    %c0_10 = arith.constant 0 : index
    %18 = vector.load %arg1[%c0_9, %c0_10] : memref<8x512xf32, #tpu.memory_space<vmem>>, vector<8x128xf32>
    %19 = vector.broadcast %16 : vector<8x1xf32> to vector<8x128xf32>
    %20 = arith.subf %18, %19 : vector<8x128xf32>
    %21 = math.exp %20 : vector<8x128xf32>
    %22 = vector.extract_strided_slice %21 {offsets = [0, 0], sizes = [8, 16], strides = [1, 1]} : vector<8x128xf32> to vector<8x16xf32>
    %23 = vector.extract_strided_slice %21 {offsets = [0, 16], sizes = [8, 16], strides = [1, 1]} : vector<8x128xf32> to vector<8x16xf32>
    %24 = arith.addf %22, %23 : vector<8x16xf32>
    %25 = vector.extract_strided_slice %21 {offsets = [0, 32], sizes = [8, 16], strides = [1, 1]} : vector<8x128xf32> to vector<8x16xf32>
    %26 = arith.addf %24, %25 : vector<8x16xf32>
    %27 = vector.extract_strided_slice %21 {offsets = [0, 48], sizes = [8, 16], strides = [1, 1]} : vector<8x128xf32> to vector<8x16xf32>
    %28 = arith.addf %26, %27 : vector<8x16xf32>
    %29 = vector.extract_strided_slice %21 {offsets = [0, 64], sizes = [8, 16], strides = [1, 1]} : vector<8x128xf32> to vector<8x16xf32>
    %30 = arith.addf %28, %29 : vector<8x16xf32>
    %31 = vector.extract_strided_slice %21 {offsets = [0, 80], sizes = [8, 16], strides = [1, 1]} : vector<8x128xf32> to vector<8x16xf32>
    %32 = arith.addf %30, %31 : vector<8x16xf32>
    %33 = vector.extract_strided_slice %21 {offsets = [0, 96], sizes = [8, 16], strides = [1, 1]} : vector<8x128xf32> to vector<8x16xf32>
    %34 = arith.addf %32, %33 : vector<8x16xf32>
    %35 = vector.extract_strided_slice %21 {offsets = [0, 112], sizes = [8, 16], strides = [1, 1]} : vector<8x128xf32> to vector<8x16xf32>
    %36 = arith.addf %34, %35 : vector<8x16xf32>
    %cst_11 = arith.constant dense<0.000000e+00> : vector<8xf32>
    %37 = vector.multi_reduction <add>, %36, %cst_11 [1] : vector<8x16xf32> to vector<8xf32>
    %38 = vector.shape_cast %37 : vector<8xf32> to vector<8x1xf32>
    %39 = arith.addf %17, %38 : vector<8x1xf32>
    %c0_12 = arith.constant 0 : index
    %c128_13 = arith.constant 128 : index
    %40 = vector.load %arg1[%c0_12, %c128_13] : memref<8x512xf32, #tpu.memory_space<vmem>>, vector<8x128xf32>
    %41 = vector.broadcast %16 : vector<8x1xf32> to vector<8x128xf32>
    %42 = arith.subf %40, %41 : vector<8x128xf32>
    %43 = math.exp %42 : vector<8x128xf32>
    %44 = vector.extract_strided_slice %43 {offsets = [0, 0], sizes = [8, 16], strides = [1, 1]} : vector<8x128xf32> to vector<8x16xf32>
    %45 = vector.extract_strided_slice %43 {offsets = [0, 16], sizes = [8, 16], strides = [1, 1]} : vector<8x128xf32> to vector<8x16xf32>
    %46 = arith.addf %44, %45 : vector<8x16xf32>
    %47 = vector.extract_strided_slice %43 {offsets = [0, 32], sizes = [8, 16], strides = [1, 1]} : vector<8x128xf32> to vector<8x16xf32>
    %48 = arith.addf %46, %47 : vector<8x16xf32>
    %49 = vector.extract_strided_slice %43 {offsets = [0, 48], sizes = [8, 16], strides = [1, 1]} : vector<8x128xf32> to vector<8x16xf32>
    %50 = arith.addf %48, %49 : vector<8x16xf32>
    %51 = vector.extract_strided_slice %43 {offsets = [0, 64], sizes = [8, 16], strides = [1, 1]} : vector<8x128xf32> to vector<8x16xf32>
    %52 = arith.addf %50, %51 : vector<8x16xf32>
    %53 = vector.extract_strided_slice %43 {offsets = [0, 80], sizes = [8, 16], strides = [1, 1]} : vector<8x128xf32> to vector<8x16xf32>
    %54 = arith.addf %52, %53 : vector<8x16xf32>
    %55 = vector.extract_strided_slice %43 {offsets = [0, 96], sizes = [8, 16], strides = [1, 1]} : vector<8x128xf32> to vector<8x16xf32>
    %56 = arith.addf %54, %55 : vector<8x16xf32>
    %57 = vector.extract_strided_slice %43 {offsets = [0, 112], sizes = [8, 16], strides = [1, 1]} : vector<8x128xf32> to vector<8x16xf32>
    %58 = arith.addf %56, %57 : vector<8x16xf32>
    %cst_14 = arith.constant dense<0.000000e+00> : vector<8xf32>
    %59 = vector.multi_reduction <add>, %58, %cst_14 [1] : vector<8x16xf32> to vector<8xf32>
    %60 = vector.shape_cast %59 : vector<8xf32> to vector<8x1xf32>
    %61 = arith.addf %39, %60 : vector<8x1xf32>
    %c0_15 = arith.constant 0 : index
    %c256_16 = arith.constant 256 : index
    %62 = vector.load %arg1[%c0_15, %c256_16] : memref<8x512xf32, #tpu.memory_space<vmem>>, vector<8x128xf32>
    %63 = vector.broadcast %16 : vector<8x1xf32> to vector<8x128xf32>
    %64 = arith.subf %62, %63 : vector<8x128xf32>
    %65 = math.exp %64 : vector<8x128xf32>
    %66 = vector.extract_strided_slice %65 {offsets = [0, 0], sizes = [8, 16], strides = [1, 1]} : vector<8x128xf32> to vector<8x16xf32>
    %67 = vector.extract_strided_slice %65 {offsets = [0, 16], sizes = [8, 16], strides = [1, 1]} : vector<8x128xf32> to vector<8x16xf32>
    %68 = arith.addf %66, %67 : vector<8x16xf32>
    %69 = vector.extract_strided_slice %65 {offsets = [0, 32], sizes = [8, 16], strides = [1, 1]} : vector<8x128xf32> to vector<8x16xf32>
    %70 = arith.addf %68, %69 : vector<8x16xf32>
    %71 = vector.extract_strided_slice %65 {offsets = [0, 48], sizes = [8, 16], strides = [1, 1]} : vector<8x128xf32> to vector<8x16xf32>
    %72 = arith.addf %70, %71 : vector<8x16xf32>
    %73 = vector.extract_strided_slice %65 {offsets = [0, 64], sizes = [8, 16], strides = [1, 1]} : vector<8x128xf32> to vector<8x16xf32>
    %74 = arith.addf %72, %73 : vector<8x16xf32>
    %75 = vector.extract_strided_slice %65 {offsets = [0, 80], sizes = [8, 16], strides = [1, 1]} : vector<8x128xf32> to vector<8x16xf32>
    %76 = arith.addf %74, %75 : vector<8x16xf32>
    %77 = vector.extract_strided_slice %65 {offsets = [0, 96], sizes = [8, 16], strides = [1, 1]} : vector<8x128xf32> to vector<8x16xf32>
    %78 = arith.addf %76, %77 : vector<8x16xf32>
    %79 = vector.extract_strided_slice %65 {offsets = [0, 112], sizes = [8, 16], strides = [1, 1]} : vector<8x128xf32> to vector<8x16xf32>
    %80 = arith.addf %78, %79 : vector<8x16xf32>
    %cst_17 = arith.constant dense<0.000000e+00> : vector<8xf32>
    %81 = vector.multi_reduction <add>, %80, %cst_17 [1] : vector<8x16xf32> to vector<8xf32>
    %82 = vector.shape_cast %81 : vector<8xf32> to vector<8x1xf32>
    %83 = arith.addf %61, %82 : vector<8x1xf32>
    %c0_18 = arith.constant 0 : index
    %c384_19 = arith.constant 384 : index
    %84 = vector.load %arg1[%c0_18, %c384_19] : memref<8x512xf32, #tpu.memory_space<vmem>>, vector<8x128xf32>
    %85 = vector.broadcast %16 : vector<8x1xf32> to vector<8x128xf32>
    %86 = arith.subf %84, %85 : vector<8x128xf32>
    %87 = math.exp %86 : vector<8x128xf32>
    %88 = vector.extract_strided_slice %87 {offsets = [0, 0], sizes = [8, 16], strides = [1, 1]} : vector<8x128xf32> to vector<8x16xf32>
    %89 = vector.extract_strided_slice %87 {offsets = [0, 16], sizes = [8, 16], strides = [1, 1]} : vector<8x128xf32> to vector<8x16xf32>
    %90 = arith.addf %88, %89 : vector<8x16xf32>
    %91 = vector.extract_strided_slice %87 {offsets = [0, 32], sizes = [8, 16], strides = [1, 1]} : vector<8x128xf32> to vector<8x16xf32>
    %92 = arith.addf %90, %91 : vector<8x16xf32>
    %93 = vector.extract_strided_slice %87 {offsets = [0, 48], sizes = [8, 16], strides = [1, 1]} : vector<8x128xf32> to vector<8x16xf32>
    %94 = arith.addf %92, %93 : vector<8x16xf32>
    %95 = vector.extract_strided_slice %87 {offsets = [0, 64], sizes = [8, 16], strides = [1, 1]} : vector<8x128xf32> to vector<8x16xf32>
    %96 = arith.addf %94, %95 : vector<8x16xf32>
    %97 = vector.extract_strided_slice %87 {offsets = [0, 80], sizes = [8, 16], strides = [1, 1]} : vector<8x128xf32> to vector<8x16xf32>
    %98 = arith.addf %96, %97 : vector<8x16xf32>
    %99 = vector.extract_strided_slice %87 {offsets = [0, 96], sizes = [8, 16], strides = [1, 1]} : vector<8x128xf32> to vector<8x16xf32>
    %100 = arith.addf %98, %99 : vector<8x16xf32>
    %101 = vector.extract_strided_slice %87 {offsets = [0, 112], sizes = [8, 16], strides = [1, 1]} : vector<8x128xf32> to vector<8x16xf32>
    %102 = arith.addf %100, %101 : vector<8x16xf32>
    %cst_20 = arith.constant dense<0.000000e+00> : vector<8xf32>
    %103 = vector.multi_reduction <add>, %102, %cst_20 [1] : vector<8x16xf32> to vector<8xf32>
    %104 = vector.shape_cast %103 : vector<8xf32> to vector<8x1xf32>
    %105 = arith.addf %83, %104 : vector<8x1xf32>
    %106 = tpu.reciprocal %105 : vector<8x1xf32> -> vector<8x1xf32>
    %107 = arith.addf %36, %58 : vector<8x16xf32>
    %108 = arith.addf %107, %80 : vector<8x16xf32>
    %109 = arith.addf %108, %102 : vector<8x16xf32>
    %110 = vector.broadcast %106 : vector<8x1xf32> to vector<8x16xf32>
    %111 = arith.mulf %109, %110 : vector<8x16xf32>
    %cst_21 = arith.constant 0.000000e+00 : f32
    %112 = vector.broadcast %cst_21 : f32 to vector<8x1xf32>
    %113 = vector.broadcast %106 : vector<8x1xf32> to vector<8x16xf32>
    %114 = arith.mulf %36, %113 : vector<8x16xf32>
    %cst_22 = arith.constant dense<0.000000e+00> : vector<8xf32>
    %115 = vector.multi_reduction <add>, %114, %cst_22 [1] : vector<8x16xf32> to vector<8xf32>
    %116 = vector.shape_cast %115 : vector<8xf32> to vector<8x1xf32>
    %117 = vector.broadcast %116 : vector<8x1xf32> to vector<8x16xf32>
    %118 = arith.mulf %117, %111 : vector<8x16xf32>
    %119 = tpu.reciprocal %118 : vector<8x16xf32> -> vector<8x16xf32>
    %120 = arith.mulf %114, %119 : vector<8x16xf32>
    %cst_23 = arith.constant 1.000000e-10 : f32
    %121 = vector.broadcast %cst_23 : f32 to vector<8x16xf32>
    %122 = arith.addf %120, %121 : vector<8x16xf32>
    %123 = math.log %122 : vector<8x16xf32>
    %124 = arith.mulf %114, %123 : vector<8x16xf32>
    %cst_24 = arith.constant dense<0.000000e+00> : vector<8xf32>
    %125 = vector.multi_reduction <add>, %124, %cst_24 [1] : vector<8x16xf32> to vector<8xf32>
    %126 = vector.shape_cast %125 : vector<8xf32> to vector<8x1xf32>
    %127 = arith.addf %112, %126 : vector<8x1xf32>
    %128 = vector.broadcast %106 : vector<8x1xf32> to vector<8x16xf32>
    %129 = arith.mulf %58, %128 : vector<8x16xf32>
    %cst_25 = arith.constant dense<0.000000e+00> : vector<8xf32>
    %130 = vector.multi_reduction <add>, %129, %cst_25 [1] : vector<8x16xf32> to vector<8xf32>
    %131 = vector.shape_cast %130 : vector<8xf32> to vector<8x1xf32>
    %132 = vector.broadcast %131 : vector<8x1xf32> to vector<8x16xf32>
    %133 = arith.mulf %132, %111 : vector<8x16xf32>
    %134 = tpu.reciprocal %133 : vector<8x16xf32> -> vector<8x16xf32>
    %135 = arith.mulf %129, %134 : vector<8x16xf32>
    %cst_26 = arith.constant 1.000000e-10 : f32
    %136 = vector.broadcast %cst_26 : f32 to vector<8x16xf32>
    %137 = arith.addf %135, %136 : vector<8x16xf32>
    %138 = math.log %137 : vector<8x16xf32>
    %139 = arith.mulf %129, %138 : vector<8x16xf32>
    %cst_27 = arith.constant dense<0.000000e+00> : vector<8xf32>
    %140 = vector.multi_reduction <add>, %139, %cst_27 [1] : vector<8x16xf32> to vector<8xf32>
    %141 = vector.shape_cast %140 : vector<8xf32> to vector<8x1xf32>
    %142 = arith.addf %127, %141 : vector<8x1xf32>
    %143 = vector.broadcast %106 : vector<8x1xf32> to vector<8x16xf32>
    %144 = arith.mulf %80, %143 : vector<8x16xf32>
    %cst_28 = arith.constant dense<0.000000e+00> : vector<8xf32>
    %145 = vector.multi_reduction <add>, %144, %cst_28 [1] : vector<8x16xf32> to vector<8xf32>
    %146 = vector.shape_cast %145 : vector<8xf32> to vector<8x1xf32>
    %147 = vector.broadcast %146 : vector<8x1xf32> to vector<8x16xf32>
    %148 = arith.mulf %147, %111 : vector<8x16xf32>
    %149 = tpu.reciprocal %148 : vector<8x16xf32> -> vector<8x16xf32>
    %150 = arith.mulf %144, %149 : vector<8x16xf32>
    %cst_29 = arith.constant 1.000000e-10 : f32
    %151 = vector.broadcast %cst_29 : f32 to vector<8x16xf32>
    %152 = arith.addf %150, %151 : vector<8x16xf32>
    %153 = math.log %152 : vector<8x16xf32>
    %154 = arith.mulf %144, %153 : vector<8x16xf32>
    %cst_30 = arith.constant dense<0.000000e+00> : vector<8xf32>
    %155 = vector.multi_reduction <add>, %154, %cst_30 [1] : vector<8x16xf32> to vector<8xf32>
    %156 = vector.shape_cast %155 : vector<8xf32> to vector<8x1xf32>
    %157 = arith.addf %142, %156 : vector<8x1xf32>
    %158 = vector.broadcast %106 : vector<8x1xf32> to vector<8x16xf32>
    %159 = arith.mulf %102, %158 : vector<8x16xf32>
    %cst_31 = arith.constant dense<0.000000e+00> : vector<8xf32>
    %160 = vector.multi_reduction <add>, %159, %cst_31 [1] : vector<8x16xf32> to vector<8xf32>
    %161 = vector.shape_cast %160 : vector<8xf32> to vector<8x1xf32>
    %162 = vector.broadcast %161 : vector<8x1xf32> to vector<8x16xf32>
    %163 = arith.mulf %162, %111 : vector<8x16xf32>
    %164 = tpu.reciprocal %163 : vector<8x16xf32> -> vector<8x16xf32>
    %165 = arith.mulf %159, %164 : vector<8x16xf32>
    %cst_32 = arith.constant 1.000000e-10 : f32
    %166 = vector.broadcast %cst_32 : f32 to vector<8x16xf32>
    %167 = arith.addf %165, %166 : vector<8x16xf32>
    %168 = math.log %167 : vector<8x16xf32>
    %169 = arith.mulf %159, %168 : vector<8x16xf32>
    %cst_33 = arith.constant dense<0.000000e+00> : vector<8xf32>
    %170 = vector.multi_reduction <add>, %169, %cst_33 [1] : vector<8x16xf32> to vector<8xf32>
    %171 = vector.shape_cast %170 : vector<8xf32> to vector<8x1xf32>
    %172 = arith.addf %157, %171 : vector<8x1xf32>
    %173 = tpu.iota {dimensions = array<i32: 0>} : vector<8x1xi32>
    %c8_i32 = arith.constant 8 : i32
    %174 = arith.muli %arg0, %c8_i32 : i32
    %175 = vector.broadcast %174 : i32 to vector<8x1xi32>
    %176 = arith.addi %175, %173 : vector<8x1xi32>
    %c2_i32 = arith.constant 2 : i32
    %177 = vector.broadcast %c2_i32 : i32 to vector<8x1xi32>
    %178 = arith.cmpi slt, %176, %177 : vector<8x1xi32>
    %cst_34 = arith.constant 0.000000e+00 : f32
    %179 = vector.broadcast %cst_34 : f32 to vector<8x1xf32>
    %180 = arith.select %178, %172, %179 : vector<8x1xi1>, vector<8x1xf32>
    %cst_35 = arith.constant dense<0.000000e+00> : vector<1xf32>
    %181 = vector.multi_reduction <add>, %180, %cst_35 [0] : vector<8x1xf32> to vector<1xf32>
    %182 = vector.shape_cast %181 : vector<1xf32> to vector<1x1xf32>
    %183 = vector.shape_cast %182 : vector<1x1xf32> to vector<1x1x1xf32>
    %c0_36 = arith.constant 0 : index
    %c0_37 = arith.constant 0 : index
    %c0_38 = arith.constant 0 : index
    %184 = vector.load %arg2[%c0_36, %c0_37, %c0_38] : memref<1x1x1xf32, #tpu.memory_space<vmem>>, vector<1x1x1xf32>
    tpu.vector_store %arg2[%c0_36, %c0_37, %c0_38], %183 {strides = array<i32>} : memref<1x1x1xf32, #tpu.memory_space<vmem>>, vector<1x1x1xf32>,
    return
  }
  func.func @transform_0(%arg0: i32) -> (i32, i32) {
    %c0_i32 = arith.constant 0 : i32
    %c0_i32_0 = arith.constant 0 : i32
    return %arg0, %c0_i32 : i32, i32
  }
  func.func @transform_1(%arg0: i32) -> (i32, i32, i32) {
    %c0_i32 = arith.constant 0 : i32
    %c0_i32_0 = arith.constant 0 : i32
    %c0_i32_1 = arith.constant 0 : i32
    return %arg0, %c0_i32, %c0_i32_0 : i32, i32, i32
  }
}

</mosaic_0001>

<llo_original>
// kernel: tpu_custom_call.1
$region0: #{tpu_custom_call.1}
  #allocation0 [shape = 'u32[]', space=smem, size = 0x4, offset = 0x4, fixed_abs, tag = 'smem constant byte address 0x4 - core index']
  #allocation1 [shape = 'u32[72,128]{1,0:T(1,128)}', space=vmem, size = 0x9000, scoped, tag = 'internal scratch']
  %s0 = inlined_call_operand.hbm [shape: f32[8,512], index: 0, kind: input, shape index: {}]
  %s1 = inlined_call_operand.hbm [shape: f32[1,1,1], index: 1, kind: output, shape index: {}]
  %s2 = sld [smem:[#allocation0]]
  $region18: #{tpu_custom_call.1} parent=0
    _
  %s4 = ssub.s32 1, %s2
  %s5 = scalar_select 0, %s4, %s2
  $region1: #{tpu_custom_call.1} parent=0
    #allocation2 [shape = 'u8[16384]{0}', space=vmem, size = 0x4000, scoped, tag = 'input window, operand 0, single buffered']
    #allocation3 [shape = 's32[1]{0}', space=sflag, size = 0x4, scoped, tag = 'scoped memory for tpu_custom_call.1']
    #allocation4 [shape = 's32[1]{0}', space=sflag, size = 0x4, scoped, tag = 'scoped memory for tpu_custom_call.1']
    #allocation5 [shape = 'u8[512]{0}', space=vmem, size = 0x400, scoped, tag = 'output window, operand 0, single buffered']
    %6 = vsyncpa [#allocation3], 0
    %7 = vsyncpa [#allocation4], 0
    // Predicated region
    $region2: #{tpu_custom_call.1} parent=1 // pred_check
      _
    $region3: #{tpu_custom_call.1} parent=1 // pred_check_branch
      %9 = sbr.rel (0) target = $region5
    $region4: #{tpu_custom_call.1} parent=1 // pred_region
      %11 = vsyncadd [#allocation3], 0
      %s13 = sshll.u32 %s0, 4
      %s14 = int_to_ptr.hbm [resolvable:$true] %s13
      %s15 = sshll.u32 [#allocation2], 4
      %s16 = int_to_ptr.vmem [resolvable:$true] %s15
      %18 = dma.hbm_to_vmem [thread:$0]  %s14, 512, %s16, [#allocation3]
    $region5: #{tpu_custom_call.1} parent=1 // pred_fallthru
      _
    // Predicated region
    $region6: #{tpu_custom_call.1} parent=1 // pred_check
      _
    $region7: #{tpu_custom_call.1} parent=1 // pred_check_branch
      %20 = sbr.rel (0) target = $region9
    $region8: #{tpu_custom_call.1} parent=1 // pred_region
      %22 = dma.done [#allocation3], 512
    $region9: #{tpu_custom_call.1} parent=1 // pred_fallthru
      _
    %v23 = vld [vmem:[#allocation2] sm:$0xff]
    %24 = vmax.xlane.f32.xlu0 %v23
    %v25 = vpop.xlane.xlu0 %24
    %v26 = vld [vmem:[#allocation2 + $0x8] sm:$0xff]
    %27 = vmax.xlane.f32.xlu0 %v26
    %v28 = vpop.xlane.xlu0 %27
    %v29 = vmax.f32 %v25, %v28
    %v30 = vld [vmem:[#allocation2 + $0x10] sm:$0xff]
    %31 = vmax.xlane.f32.xlu0 %v30
    %v32 = vpop.xlane.xlu0 %31
    %v33 = vmax.f32 %v29, %v32
    %v34 = vld [vmem:[#allocation2 + $0x18] sm:$0xff]
    %35 = vmax.xlane.f32.xlu0 %v34
    %v36 = vpop.xlane.xlu0 %35
    %v37 = vmax.f32 %v33, %v36
    %v38 = vsub.f32 %v23, %v37
    %v39 = vmul.f32 %v38, 1.442695
    %v40 = vpow.pop %v39
    %42 = vrot.lane.b32.xlu0 %v40, 112
    %v43 = vpop.permute.xlu0 %42
    %v45 = vadd.f32 %v40, %v43
    %46 = vrot.lane.b32.xlu0 %v40, 96
    %v47 = vpop.permute.xlu0 %46
    %v49 = vadd.f32 %v45, %v47
    %50 = vrot.lane.b32.xlu0 %v40, 80
    %v51 = vpop.permute.xlu0 %50
    %v53 = vadd.f32 %v49, %v51
    %54 = vrot.lane.b32.xlu0 %v40, 64
    %v55 = vpop.permute.xlu0 %54
    %v57 = vadd.f32 %v53, %v55
    %58 = vrot.lane.b32.xlu0 %v40, 48
    %v59 = vpop.permute.xlu0 %58
    %v61 = vadd.f32 %v57, %v59
    %62 = vrot.lane.b32.xlu0 %v40, 32
    %v63 = vpop.permute.xlu0 %62
    %v65 = vadd.f32 %v61, %v63
    %66 = vrot.lane.b32.xlu0 %v40, 16
    %v67 = vpop.permute.xlu0 %66
    %v69 = vadd.f32 %v65, %v67
    %vm70 = vcmask 130048
    %v71 = vsel %vm70, %v69, 0.0
    %72 = vadd.xlane.f32.xlu0 %v71
    %v73 = vpop.xlane.xlu0 %72
    %v74 = vadd.f32 %v73, 0.0
    %v75 = vsub.f32 %v26, %v37
    %v76 = vmul.f32 %v75, 1.442695
    %v77 = vpow.pop %v76
    %79 = vrot.lane.b32.xlu0 %v77, 112
    %v80 = vpop.permute.xlu0 %79
    %v82 = vadd.f32 %v77, %v80
    %83 = vrot.lane.b32.xlu0 %v77, 96
    %v84 = vpop.permute.xlu0 %83
    %v86 = vadd.f32 %v82, %v84
    %87 = vrot.lane.b32.xlu0 %v77, 80
    %v88 = vpop.permute.xlu0 %87
    %v90 = vadd.f32 %v86, %v88
    %91 = vrot.lane.b32.xlu0 %v77, 64
    %v92 = vpop.permute.xlu0 %91
    %v94 = vadd.f32 %v90, %v92
    %95 = vrot.lane.b32.xlu0 %v77, 48
    %v96 = vpop.permute.xlu0 %95
    %v98 = vadd.f32 %v94, %v96
    %99 = vrot.lane.b32.xlu0 %v77, 32
    %v100 = vpop.permute.xlu0 %99
    %v102 = vadd.f32 %v98, %v100
    %103 = vrot.lane.b32.xlu0 %v77, 16
    %v104 = vpop.permute.xlu0 %103
    %v106 = vadd.f32 %v102, %v104
    %v107 = vsel %vm70, %v106, 0.0
    %108 = vadd.xlane.f32.xlu0 %v107
    %v109 = vpop.xlane.xlu0 %108
    %v110 = vadd.f32 %v74, %v109
    %v111 = vsub.f32 %v30, %v37
    %v112 = vmul.f32 %v111, 1.442695
    %v113 = vpow.pop %v112
    %115 = vrot.lane.b32.xlu0 %v113, 112
    %v116 = vpop.permute.xlu0 %115
    %v118 = vadd.f32 %v113, %v116
    %119 = vrot.lane.b32.xlu0 %v113, 96
    %v120 = vpop.permute.xlu0 %119
    %v122 = vadd.f32 %v118, %v120
    %123 = vrot.lane.b32.xlu0 %v113, 80
    %v124 = vpop.permute.xlu0 %123
    %v126 = vadd.f32 %v122, %v124
    %127 = vrot.lane.b32.xlu0 %v113, 64
    %v128 = vpop.permute.xlu0 %127
    %v130 = vadd.f32 %v126, %v128
    %131 = vrot.lane.b32.xlu0 %v113, 48
    %v132 = vpop.permute.xlu0 %131
    %v134 = vadd.f32 %v130, %v132
    %135 = vrot.lane.b32.xlu0 %v113, 32
    %v136 = vpop.permute.xlu0 %135
    %v138 = vadd.f32 %v134, %v136
    %139 = vrot.lane.b32.xlu0 %v113, 16
    %v140 = vpop.permute.xlu0 %139
    %v142 = vadd.f32 %v138, %v140
    %v143 = vsel %vm70, %v142, 0.0
    %144 = vadd.xlane.f32.xlu0 %v143
    %v145 = vpop.xlane.xlu0 %144
    %v146 = vadd.f32 %v110, %v145
    %v147 = vsub.f32 %v34, %v37
    %v148 = vmul.f32 %v147, 1.442695
    %v149 = vpow.pop %v148
    %151 = vrot.lane.b32.xlu0 %v149, 112
    %v152 = vpop.permute.xlu0 %151
    %v154 = vadd.f32 %v149, %v152
    %155 = vrot.lane.b32.xlu0 %v149, 96
    %v156 = vpop.permute.xlu0 %155
    %v158 = vadd.f32 %v154, %v156
    %159 = vrot.lane.b32.xlu0 %v149, 80
    %v160 = vpop.permute.xlu0 %159
    %v162 = vadd.f32 %v158, %v160
    %163 = vrot.lane.b32.xlu0 %v149, 64
    %v164 = vpop.permute.xlu0 %163
    %v166 = vadd.f32 %v162, %v164
    %167 = vrot.lane.b32.xlu0 %v149, 48
    %v168 = vpop.permute.xlu0 %167
    %v170 = vadd.f32 %v166, %v168
    %171 = vrot.lane.b32.xlu0 %v149, 32
    %v172 = vpop.permute.xlu0 %171
    %v174 = vadd.f32 %v170, %v172
    %175 = vrot.lane.b32.xlu0 %v149, 16
    %v176 = vpop.permute.xlu0 %175
    %v178 = vadd.f32 %v174, %v176
    %v179 = vsel %vm70, %v178, 0.0
    %180 = vadd.xlane.f32.xlu0 %v179
    %v181 = vpop.xlane.xlu0 %180
    %v182 = vadd.f32 %v146, %v181
    %v183 = vrcp.pop %v182
    %v184 = vmul.f32 %v182, %v183
    %v185 = vsub.f32 1.0, %v184
    %v186 = vmul.f32 %v183, %v185
    %v187 = vadd.f32 %v183, %v186
    %vm188 = vweird.f32 %v182
    %vm189 = vweird.f32 %v183
    %vm190 = vmor %vm188, %vm189
    %v191 = vsel %vm190, %v183, %v187
    %v192 = vand.u32 2147483647, %v182
    %vm193 = vcmp.eq.f32.partialorder %v192, 8.507059e+37
    %v194 = vand.u32 %v182, 2147483648
    %v195 = vor.u32 1.1754944e-38, %v194
    %v196 = vsel %vm193, %v195, %v191
    %v197 = vadd.f32 %v69, %v106
    %v198 = vadd.f32 %v197, %v142
    %v199 = vadd.f32 %v198, %v178
    %v200 = vmul.f32 %v199, %v196
    %v201 = vmul.f32 %v69, %v196
    %v202 = vsel %vm70, %v201, 0.0
    %203 = vadd.xlane.f32.xlu0 %v202
    %v204 = vpop.xlane.xlu0 %203
    %v205 = vmul.f32 %v204, %v200
    %v206 = vrcp.pop %v205
    %v207 = vmul.f32 %v205, %v206
    %v208 = vsub.f32 1.0, %v207
    %v209 = vmul.f32 %v206, %v208
    %v210 = vadd.f32 %v206, %v209
    %vm211 = vweird.f32 %v205
    %vm212 = vweird.f32 %v206
    %vm213 = vmor %vm211, %vm212
    %v214 = vsel %vm213, %v206, %v210
    %v215 = vand.u32 2147483647, %v205
    %vm216 = vcmp.eq.f32.partialorder %v215, 8.507059e+37
    %v217 = vand.u32 %v205, 2147483648
    %v218 = vor.u32 1.1754944e-38, %v217
    %v219 = vsel %vm216, %v218, %v214
    %v220 = vmul.f32 %v201, %v219
    %v221 = vadd.f32 %v220, 1e-10
    %v222 = vlog2.pop %v221
    %v223 = vmul.f32 %v222, 0.6931472
    %v224 = vmul.f32 %v201, %v223
    %v225 = vsel %vm70, %v224, 0.0
    %226 = vadd.xlane.f32.xlu0 %v225
    %v227 = vpop.xlane.xlu0 %226
    %v228 = vadd.f32 %v227, 0.0
    %v229 = vmul.f32 %v106, %v196
    %v230 = vsel %vm70, %v229, 0.0
    %231 = vadd.xlane.f32.xlu0 %v230
    %v232 = vpop.xlane.xlu0 %231
    %v233 = vmul.f32 %v232, %v200
    %v234 = vrcp.pop %v233
    %v235 = vmul.f32 %v233, %v234
    %v236 = vsub.f32 1.0, %v235
    %v237 = vmul.f32 %v234, %v236
    %v238 = vadd.f32 %v234, %v237
    %vm239 = vweird.f32 %v233
    %vm240 = vweird.f32 %v234
    %vm241 = vmor %vm239, %vm240
    %v242 = vsel %vm241, %v234, %v238
    %v243 = vand.u32 2147483647, %v233
    %vm244 = vcmp.eq.f32.partialorder %v243, 8.507059e+37
    %v245 = vand.u32 %v233, 2147483648
    %v246 = vor.u32 1.1754944e-38, %v245
    %v247 = vsel %vm244, %v246, %v242
    %v248 = vmul.f32 %v229, %v247
    %v249 = vadd.f32 %v248, 1e-10
    %v250 = vlog2.pop %v249
    %v251 = vmul.f32 %v250, 0.6931472
    %v252 = vmul.f32 %v229, %v251
    %v253 = vsel %vm70, %v252, 0.0
    %254 = vadd.xlane.f32.xlu0 %v253
    %v255 = vpop.xlane.xlu0 %254
    %v256 = vadd.f32 %v228, %v255
    %v257 = vmul.f32 %v142, %v196
    %v258 = vsel %vm70, %v257, 0.0
    %259 = vadd.xlane.f32.xlu0 %v258
    %v260 = vpop.xlane.xlu0 %259
    %v261 = vmul.f32 %v260, %v200
    %v262 = vrcp.pop %v261
    %v263 = vmul.f32 %v261, %v262
    %v264 = vsub.f32 1.0, %v263
    %v265 = vmul.f32 %v262, %v264
    %v266 = vadd.f32 %v262, %v265
    %vm267 = vweird.f32 %v261
    %vm268 = vweird.f32 %v262
    %vm269 = vmor %vm267, %vm268
    %v270 = vsel %vm269, %v262, %v266
    %v271 = vand.u32 2147483647, %v261
    %vm272 = vcmp.eq.f32.partialorder %v271, 8.507059e+37
    %v273 = vand.u32 %v261, 2147483648
    %v274 = vor.u32 1.1754944e-38, %v273
    %v275 = vsel %vm272, %v274, %v270
    %v276 = vmul.f32 %v257, %v275
    %v277 = vadd.f32 %v276, 1e-10
    %v278 = vlog2.pop %v277
    %v279 = vmul.f32 %v278, 0.6931472
    %v280 = vmul.f32 %v257, %v279
    %v281 = vsel %vm70, %v280, 0.0
    %282 = vadd.xlane.f32.xlu0 %v281
    %v283 = vpop.xlane.xlu0 %282
    %v284 = vadd.f32 %v256, %v283
    %v285 = vmul.f32 %v178, %v196
    %v286 = vsel %vm70, %v285, 0.0
    %287 = vadd.xlane.f32.xlu0 %v286
    %v288 = vpop.xlane.xlu0 %287
    %v289 = vmul.f32 %v288, %v200
    %v290 = vrcp.pop %v289
    %v291 = vmul.f32 %v289, %v290
    %v292 = vsub.f32 1.0, %v291
    %v293 = vmul.f32 %v290, %v292
    %v294 = vadd.f32 %v290, %v293
    %vm295 = vweird.f32 %v289
    %vm296 = vweird.f32 %v290
    %vm297 = vmor %vm295, %vm296
    %v298 = vsel %vm297, %v290, %v294
    %v299 = vand.u32 2147483647, %v289
    %vm300 = vcmp.eq.f32.partialorder %v299, 8.507059e+37
    %v301 = vand.u32 %v289, 2147483648
    %v302 = vor.u32 1.1754944e-38, %v301
    %v303 = vsel %vm300, %v302, %v298
    %v304 = vmul.f32 %v285, %v303
    %v305 = vadd.f32 %v304, 1e-10
    %v306 = vlog2.pop %v305
    %v307 = vmul.f32 %v306, 0.6931472
    %v308 = vmul.f32 %v285, %v307
    %v309 = vsel %vm70, %v308, 0.0
    %310 = vadd.xlane.f32.xlu0 %v309
    %v311 = vpop.xlane.xlu0 %310
    %v312 = vadd.f32 %v284, %v311
    %v313 = vlaneseq
    %v314 = vshrl.u32 %v313, 7
    %s315 = smul.u32 0, 8
    %v316 = vstv %s315
    %v317 = vadd.s32 %v316, %v314
    %vm318 = vcmp.lt.s32.totalorder %v317, 2
    %v319 = vsel %vm318, %v312, 0.0
    %v320 = vrot.slane %v319, 4
    %v321 = vadd.f32 %v319, %v320
    %v322 = vrot.slane %v321, 2
    %v323 = vadd.f32 %v321, %v322
    %v324 = vrot.slane %v323, 1
    %v325 = vadd.f32 %v323, %v324
    %vm326 = vcmask 0
    %327 = vst.msk [vmem:[#allocation5] sm:$0x1] %vm326, %v325
    // Predicated region
    $region10: #{tpu_custom_call.1} parent=1 // pred_check
      _
    $region11: #{tpu_custom_call.1} parent=1 // pred_check_branch
      %329 = sbr.rel (0) target = $region13
    $region12: #{tpu_custom_call.1} parent=1 // pred_region
      %331 = vsyncadd [#allocation4], 0
      %s333 = sshll.u32 [#allocation5], 4
      %s334 = int_to_ptr.vmem [resolvable:$true] %s333
      %s335 = sshll.u32 %s1, 4
      %s336 = int_to_ptr.hbm [resolvable:$true] %s335
      %338 = dma.vmem_to_hbm [thread:$0]  %s334, 16, %s336, [#allocation4]
    $region13: #{tpu_custom_call.1} parent=1 // pred_fallthru
      _
    // Predicated region
    $region14: #{tpu_custom_call.1} parent=1 // pred_check
      _
    $region15: #{tpu_custom_call.1} parent=1 // pred_check_branch
      %340 = sbr.rel (0) target = $region17
    $region16: #{tpu_custom_call.1} parent=1 // pred_region
      %342 = dma.done [#allocation4], 16
    $region17: #{tpu_custom_call.1} parent=1 // pred_fallthru
      _
    %343 = vsyncpa [#allocation3], 1
    %344 = vsyncpa [#allocation4], 1

</llo_original>
